<compile_context>
chip_gen: v7x
topology: tpu7x:2x2x1
jax: 0.10.0
libtpu: 0.0.40
codegen_flags: <defaults>
</compile_context>

<pallas_src>
import functools

import jax
import jax.numpy as jnp
from jax.experimental import pallas as pl
from jax.experimental.pallas import tpu as pltpu


# ---------------------------------------------------------------------------
# Single-pass kernel: whole (C, HW) plane per batch row resident in VMEM.
# ---------------------------------------------------------------------------
def _se_kernel(x_ref, w1t_ref, b1_ref, w2t_ref, b2_ref, out_ref, *, inv_hw):
    # x_ref/out_ref: (Bt, C, HW); weights pre-transposed in the wrapper.
    x = x_ref[...]
    pooled = jnp.sum(x.astype(jnp.float32), axis=-1) * inv_hw        # (Bt, C)
    h = jnp.dot(pooled, w1t_ref[...],
                preferred_element_type=jnp.float32) + b1_ref[...]    # (Bt, C//r)
    h = jnp.maximum(h, 0.0)
    y = jnp.dot(h, w2t_ref[...],
                preferred_element_type=jnp.float32) + b2_ref[...]    # (Bt, C)
    y = jnp.clip(y, 0.0, 1.0)
    out_ref[...] = x * y[:, :, None].astype(x.dtype)


# ---------------------------------------------------------------------------
# Two-pass fallback for feature maps too large to hold one batch row in VMEM.
# Pass 1: spatially-chunked pooled sum + the tiny FC stack -> gate y (B, C, 1)
# Pass 2: spatially-chunked elementwise scale              -> out
# ---------------------------------------------------------------------------
def _pool_fc_kernel(x_ref, w1t_ref, b1_ref, w2t_ref, b2_ref, y_ref, acc_ref,
                    *, inv_hw, hw, sc):
    s = pl.program_id(1)

    @pl.when(s == 0)
    def _():
        acc_ref[...] = jnp.zeros_like(acc_ref)

    x = x_ref[...].astype(jnp.float32)                               # (Bt, C, Sc)
    if hw % sc != 0:
        # Mask the ragged spatial tail (OOB lanes hold unspecified data and
        # would otherwise corrupt the pooled sum).
        pos = s * sc + jax.lax.broadcasted_iota(jnp.int32, x.shape, 2)
        x = jnp.where(pos < hw, x, 0.0)
    acc_ref[...] += jnp.sum(x, axis=-1)                              # (Bt, C)

    @pl.when(s == pl.num_programs(1) - 1)
    def _():
        pooled = acc_ref[...] * inv_hw
        h = jnp.dot(pooled, w1t_ref[...],
                    preferred_element_type=jnp.float32) + b1_ref[...]
        h = jnp.maximum(h, 0.0)
        y = jnp.dot(h, w2t_ref[...],
                    preferred_element_type=jnp.float32) + b2_ref[...]
        y_ref[...] = jnp.clip(y, 0.0, 1.0)[:, :, None]               # (Bt, C, 1)


def _scale_kernel(y_ref, x_ref, out_ref):
    x = x_ref[...]                                                   # (Bt, C, Sc)
    out_ref[...] = x * y_ref[...].astype(x.dtype)                    # y: (Bt, C, 1)


def _vmem_limit(bytes_needed):
    # Floor at 32 MiB (plenty of compiler headroom, still <= v7x's 64 MiB/TC).
    return int(max(32 << 20, bytes_needed))


def se_layer(x, w1, b1, w2, b2, *, block_vmem_bytes=8 << 20, block_batch=None,
             spatial_chunk=None, force_two_pass=False):
    """x: (B, C, H, W). Returns (B, C, H, W). Matches SELayer.forward."""
    B, C, H, W = x.shape
    HW = H * W
    itemsize = x.dtype.itemsize
    hidden = w1.shape[0]

    x_flat = x.reshape(B, C, HW)

    # Pre-transpose weights once in XLA so the kernel does plain matmuls.
    w1t = jnp.asarray(w1, jnp.float32).T                 # (C, C//r)
    w2t = jnp.asarray(w2, jnp.float32).T                 # (C//r, C)
    b1 = jnp.asarray(b1, jnp.float32).reshape(1, -1)
    b2 = jnp.asarray(b2, jnp.float32).reshape(1, -1)
    weight_bytes = 4 * (w1t.size + w2t.size + b1.size + b2.size)

    per_row_bytes = C * HW * itemsize
    flops = 4 * B * C * hidden + 2 * B * C * HW          # two FCs + pool + scale
    io_bytes = 2 * B * C * HW * itemsize + weight_bytes

    two_pass = force_two_pass or (per_row_bytes > block_vmem_bytes)

    if not two_pass:
        # ------------------ single-pass path ------------------
        if block_batch is None:
            Bt = max(1, min(B, block_vmem_bytes // per_row_bytes))
            if Bt >= B and B >= 2:
                # >= 2 grid steps so ("parallel",) can use both v7x TensorCores.
                Bt = (B + 1) // 2
        else:
            Bt = min(int(block_batch), B)
        grid = (pl.cdiv(B, Bt),)

        vmem_need = 4 * Bt * per_row_bytes + 2 * weight_bytes + (8 << 20)

        kernel = functools.partial(_se_kernel, inv_hw=1.0 / float(HW))
        out_flat = pl.pallas_call(
            kernel,
            out_shape=jax.ShapeDtypeStruct((B, C, HW), x.dtype),
            grid_spec=pltpu.PrefetchScalarGridSpec(
                num_scalar_prefetch=0,
                grid=grid,
                in_specs=[
                    # Activations: tiled over batch; ragged last block is fine
                    # (rows are independent, OOB writes are dropped).
                    pl.BlockSpec((Bt, C, HW), lambda b: (b, 0, 0)),
                    # Weights/biases: constant block index -> resident in VMEM.
                    # NOTE: pipeline_mode=pl.Buffered(1) would halve their VMEM
                    # footprint; left at the default since they are small
                    # relative to the activation blocks.
                    pl.BlockSpec(w1t.shape, lambda b: (0, 0)),
                    pl.BlockSpec(b1.shape, lambda b: (0, 0)),
                    pl.BlockSpec(w2t.shape, lambda b: (0, 0)),
                    pl.BlockSpec(b2.shape, lambda b: (0, 0)),
                ],
                out_specs=pl.BlockSpec((Bt, C, HW), lambda b: (b, 0, 0)),
            ),
            compiler_params=pltpu.CompilerParams(
                dimension_semantics=("parallel",),
                vmem_limit_bytes=_vmem_limit(vmem_need),
            ),
            cost_estimate=pl.CostEstimate(
                flops=int(flops), transcendentals=0,
                bytes_accessed=int(io_bytes)),
        )(x_flat, w1t, b1, w2t, b2)
        return out_flat.reshape(B, C, H, W)

    # ------------------ two-pass fallback ------------------
    Bt = min(B, 8) if block_batch is None else min(int(block_batch), B)
    if spatial_chunk is not None:
        Sc = int(spatial_chunk)
    else:
        Sc = block_vmem_bytes // max(1, Bt * C * itemsize)
    if Sc >= HW:
        Sc = HW                               # single full-extent chunk
    else:
        Sc = max(128, (Sc // 128) * 128)      # lane-aligned chunks
    grid = (pl.cdiv(B, Bt), pl.cdiv(HW, Sc))

    chunk_bytes = Bt * C * Sc * itemsize
    vmem_limit = _vmem_limit(4 * chunk_bytes + 2 * weight_bytes + (8 << 20))

    # Pass 1: pooled mean + FC stack -> gate y (B, C, 1) in f32.
    pool_kernel = functools.partial(
        _pool_fc_kernel, inv_hw=1.0 / float(HW), hw=HW, sc=Sc)
    y = pl.pallas_call(
        pool_kernel,
        out_shape=jax.ShapeDtypeStruct((B, C, 1), jnp.float32),
        grid_spec=pltpu.PrefetchScalarGridSpec(
            num_scalar_prefetch=0,
            grid=grid,
            in_specs=[
                pl.BlockSpec((Bt, C, Sc), lambda b, s: (b, 0, s)),
                pl.BlockSpec(w1t.shape, lambda b, s: (0, 0)),
                pl.BlockSpec(b1.shape, lambda b, s: (0, 0)),
                pl.BlockSpec(w2t.shape, lambda b, s: (0, 0)),
                pl.BlockSpec(b2.shape, lambda b, s: (0, 0)),
            ],
            out_specs=pl.BlockSpec((Bt, C, 1), lambda b, s: (b, 0, 0)),
            scratch_shapes=[pltpu.VMEM((Bt, C), jnp.float32)],
        ),
        compiler_params=pltpu.CompilerParams(
            dimension_semantics=("parallel", "arbitrary"),
            vmem_limit_bytes=vmem_limit,
        ),
        cost_estimate=pl.CostEstimate(
            flops=int(4 * B * C * hidden + B * C * HW), transcendentals=0,
            bytes_accessed=int(B * C * HW * itemsize + weight_bytes)),
    )(x_flat, w1t, b1, w2t, b2)

    # Pass 2: out = x * y (broadcast over the spatial axis).
    out_flat = pl.pallas_call(
        _scale_kernel,
        out_shape=jax.ShapeDtypeStruct((B, C, HW), x.dtype),
        grid_spec=pltpu.PrefetchScalarGridSpec(
            num_scalar_prefetch=0,
            grid=grid,
            in_specs=[
                pl.BlockSpec((Bt, C, 1), lambda b, s: (b, 0, 0)),
                pl.BlockSpec((Bt, C, Sc), lambda b, s: (b, 0, s)),
            ],
            out_specs=pl.BlockSpec((Bt, C, Sc), lambda b, s: (b, 0, s)),
        ),
        compiler_params=pltpu.CompilerParams(
            dimension_semantics=("parallel", "parallel"),
            vmem_limit_bytes=vmem_limit,
        ),
        cost_estimate=pl.CostEstimate(
            flops=int(B * C * HW), transcendentals=0,
            bytes_accessed=int(2 * B * C * HW * itemsize)),
    )(y, x_flat)
    return out_flat.reshape(B, C, H, W)


def init_params(key, channel, reduction=4):
    """Deterministic synthetic init matching nn.Linear shapes."""
    hidden = channel // reduction
    k1, k2, k3, k4 = jax.random.split(key, 4)
    bound1 = 1.0 / (channel ** 0.5)
    bound2 = 1.0 / (hidden ** 0.5) if hidden > 0 else 1.0
    w1 = jax.random.uniform(k1, (hidden, channel), jnp.float32, -bound1, bound1)
    b1 = jax.random.uniform(k2, (1, hidden), jnp.float32, -bound1, bound1)
    w2 = jax.random.uniform(k3, (channel, hidden), jnp.float32, -bound2, bound2)
    b2 = jax.random.uniform(k4, (1, channel), jnp.float32, -bound2, bound2)
    return w1, b1, w2, b2


def se_layer_ref(x, w1, b1, w2, b2):
    """Pure-JAX reference (mirrors the PyTorch forward)."""
    pooled = jnp.mean(x.astype(jnp.float32), axis=(2, 3))     # (B, C)
    h = jnp.maximum(pooled @ w1.T + b1, 0.0)                  # (B, C//r)
    y = jnp.clip(h @ w2.T + b2, 0.0, 1.0)                     # (B, C)
    return x * y[:, :, None, None].astype(x.dtype)


if __name__ == "__main__":
    key = jax.random.PRNGKey(0)
    k1, k2, k3, k4 = jax.random.split(key, 4)

    # Config 1: single-pass path. B=3 with auto block -> Bt=2, grid=(2,):
    # exercises the cdiv/ragged batch tail and the masked (HW=196) tail store.
    B, C, H, W = 3, 8, 14, 14
    x = jax.random.normal(k1, (B, C, H, W), dtype=jnp.float32)
    w1, b1, w2, b2 = init_params(k2, C, reduction=4)
    out = jax.block_until_ready(se_layer(x, w1, b1, w2, b2))
    ref = se_layer_ref(x, w1, b1, w2, b2)
    assert out.shape == (B, C, H, W)
    assert jnp.allclose(out, ref, atol=1e-5, rtol=1e-5), "single-pass mismatch"

    # Config 2: forced two-pass fallback. HW=324 with 128-wide chunks exercises
    # the masked ragged spatial tail; block_batch=2 over B=3 exercises the
    # ragged batch tail in both fallback kernels.
    B2, C2, H2, W2 = 3, 8, 18, 18
    x2 = jax.random.normal(k3, (B2, C2, H2, W2), dtype=jnp.float32)
    w1b, b1b, w2b, b2b = init_params(k4, C2, reduction=4)
    out2 = jax.block_until_ready(
        se_layer(x2, w1b, b1b, w2b, b2b,
                 force_two_pass=True, block_batch=2, spatial_chunk=128))
    ref2 = se_layer_ref(x2, w1b, b1b, w2b, b2b)
    assert out2.shape == (B2, C2, H2, W2)
    assert jnp.allclose(out2, ref2, atol=1e-5, rtol=1e-5), "two-pass mismatch"

    print("KERNEL_OK")
</pallas_src>

<mosaic_0001>
module attributes {stable_mosaic.version = 11 : i64} {
  func.func @_se_kernel(%arg0: i32, %arg1: memref<2x8x196xf32, #tpu.memory_space<vmem>>, %arg2: memref<8x2xf32, #tpu.memory_space<vmem>>, %arg3: memref<1x2xf32, #tpu.memory_space<vmem>>, %arg4: memref<2x8xf32, #tpu.memory_space<vmem>>, %arg5: memref<1x8xf32, #tpu.memory_space<vmem>>, %arg6: memref<2x8x196xf32, #tpu.memory_space<vmem>>) attributes {dimension_semantics = [#tpu.dimension_semantics<parallel>], iteration_bounds = array<i64: 2>, scalar_prefetch = 0 : i64, scratch_operands = 0 : i64, tpu.core_type = #tpu.core_type<tc>, window_params = [{transform_indices = @transform_0, window_bounds = array<i64: 2, 8, 196>}, {pipeline_mode = #tpu.pipeline_mode<synchronous>, transform_indices = @transform_1, window_bounds = array<i64: 8, 2>}, {pipeline_mode = #tpu.pipeline_mode<synchronous>, transform_indices = @transform_2, window_bounds = array<i64: 1, 2>}, {pipeline_mode = #tpu.pipeline_mode<synchronous>, transform_indices = @transform_3, window_bounds = array<i64: 2, 8>}, {pipeline_mode = #tpu.pipeline_mode<synchronous>, transform_indices = @transform_4, window_bounds = array<i64: 1, 8>}, {transform_indices = @transform_5, window_bounds = array<i64: 2, 8, 196>}]} {
    %c0 = arith.constant 0 : index
    %c0_0 = arith.constant 0 : index
    %c0_1 = arith.constant 0 : index
    %0 = vector.load %arg1[%c0, %c0_0, %c0_1] : memref<2x8x196xf32, #tpu.memory_space<vmem>>, vector<2x8x196xf32>
    %cst = arith.constant dense<0.000000e+00> : vector<2x8xf32>
    %1 = vector.multi_reduction <add>, %0, %cst [2] : vector<2x8x196xf32> to vector<2x8xf32>
    %cst_2 = arith.constant 0.00510204071 : f32
    %2 = vector.broadcast %cst_2 : f32 to vector<2x8xf32>
    %3 = arith.mulf %1, %2 : vector<2x8xf32>
    %c0_3 = arith.constant 0 : index
    %c0_4 = arith.constant 0 : index
    %4 = vector.load %arg2[%c0_3, %c0_4] : memref<8x2xf32, #tpu.memory_space<vmem>>, vector<8x2xf32>
    %cst_5 = arith.constant dense<0.000000e+00> : vector<2x2xf32>
    %5 = tpu.matmul %3, %4, %cst_5 {dimension_numbers = #tpu.dot_dimension_numbers<[1], [0], [0], [1], [0, 0, 1, 1], [], []>} : vector<2x8xf32>, vector<8x2xf32>, vector<2x2xf32> -> vector<2x2xf32>
    %c0_6 = arith.constant 0 : index
    %c0_7 = arith.constant 0 : index
    %6 = vector.load %arg3[%c0_6, %c0_7] : memref<1x2xf32, #tpu.memory_space<vmem>>, vector<1x2xf32>
    %7 = vector.broadcast %6 : vector<1x2xf32> to vector<2x2xf32>
    %8 = arith.addf %5, %7 : vector<2x2xf32>
    %cst_8 = arith.constant 0.000000e+00 : f32
    %9 = vector.broadcast %cst_8 : f32 to vector<2x2xf32>
    %10 = arith.maximumf %8, %9 : vector<2x2xf32>
    %c0_9 = arith.constant 0 : index
    %c0_10 = arith.constant 0 : index
    %11 = vector.load %arg4[%c0_9, %c0_10] : memref<2x8xf32, #tpu.memory_space<vmem>>, vector<2x8xf32>
    %cst_11 = arith.constant dense<0.000000e+00> : vector<2x8xf32>
    %12 = tpu.matmul %10, %11, %cst_11 {dimension_numbers = #tpu.dot_dimension_numbers<[1], [0], [0], [1], [0, 0, 1, 1], [], []>} : vector<2x2xf32>, vector<2x8xf32>, vector<2x8xf32> -> vector<2x8xf32>
    %c0_12 = arith.constant 0 : index
    %c0_13 = arith.constant 0 : index
    %13 = vector.load %arg5[%c0_12, %c0_13] : memref<1x8xf32, #tpu.memory_space<vmem>>, vector<1x8xf32>
    %14 = vector.broadcast %13 : vector<1x8xf32> to vector<2x8xf32>
    %15 = arith.addf %12, %14 : vector<2x8xf32>
    %cst_14 = arith.constant 0.000000e+00 : f32
    %cst_15 = arith.constant 1.000000e+00 : f32
    %16 = vector.broadcast %cst_14 : f32 to vector<2x8xf32>
    %17 = arith.maximumf %16, %15 : vector<2x8xf32>
    %18 = vector.broadcast %cst_15 : f32 to vector<2x8xf32>
    %19 = arith.minimumf %18, %17 : vector<2x8xf32>
    %20 = vector.shape_cast %19 : vector<2x8xf32> to vector<2x8x1xf32>
    %21 = vector.broadcast %20 : vector<2x8x1xf32> to vector<2x8x196xf32>
    %22 = arith.mulf %0, %21 : vector<2x8x196xf32>
    %c0_16 = arith.constant 0 : index
    %c0_17 = arith.constant 0 : index
    %c0_18 = arith.constant 0 : index
    %23 = vector.load %arg6[%c0_16, %c0_17, %c0_18] : memref<2x8x196xf32, #tpu.memory_space<vmem>>, vector<2x8x196xf32>
    tpu.vector_store %arg6[%c0_16, %c0_17, %c0_18], %22 {strides = array<i32>} : memref<2x8x196xf32, #tpu.memory_space<vmem>>, vector<2x8x196xf32>,
    return
  }
  func.func @transform_0(%arg0: i32) -> (i32, i32, i32) {
    %c0_i32 = arith.constant 0 : i32
    %c0_i32_0 = arith.constant 0 : i32
    %c0_i32_1 = arith.constant 0 : i32
    return %arg0, %c0_i32, %c0_i32_0 : i32, i32, i32
  }
  func.func @transform_1(%arg0: i32) -> (i32, i32) {
    %c0_i32 = arith.constant 0 : i32
    %c0_i32_0 = arith.constant 0 : i32
    %c0_i32_1 = arith.constant 0 : i32
    return %c0_i32, %c0_i32_0 : i32, i32
  }
  func.func @transform_2(%arg0: i32) -> (i32, i32) {
    %c0_i32 = arith.constant 0 : i32
    %c0_i32_0 = arith.constant 0 : i32
    %c0_i32_1 = arith.constant 0 : i32
    return %c0_i32, %c0_i32_0 : i32, i32
  }
  func.func @transform_3(%arg0: i32) -> (i32, i32) {
    %c0_i32 = arith.constant 0 : i32
    %c0_i32_0 = arith.constant 0 : i32
    %c0_i32_1 = arith.constant 0 : i32
    return %c0_i32, %c0_i32_0 : i32, i32
  }
  func.func @transform_4(%arg0: i32) -> (i32, i32) {
    %c0_i32 = arith.constant 0 : i32
    %c0_i32_0 = arith.constant 0 : i32
    %c0_i32_1 = arith.constant 0 : i32
    return %c0_i32, %c0_i32_0 : i32, i32
  }
  func.func @transform_5(%arg0: i32) -> (i32, i32, i32) {
    %c0_i32 = arith.constant 0 : i32
    %c0_i32_0 = arith.constant 0 : i32
    %c0_i32_1 = arith.constant 0 : i32
    return %arg0, %c0_i32, %c0_i32_0 : i32, i32, i32
  }
}

</mosaic_0001>

<llo_original>
// kernel: tpu_custom_call.1
$region0: #{tpu_custom_call.1}
  #allocation0 [shape = 'u32[]', space=smem, size = 0x4, offset = 0x4, fixed_abs, tag = 'smem constant byte address 0x4 - core index']
  #allocation1 [shape = 'u32[144,128]{1,0:T(1,128)}', space=vmem, size = 0x12000, scoped, tag = 'internal scratch']
  %s0 = inlined_call_operand.hbm [shape: f32[3,8,196], index: 0, kind: input, shape index: {}]
  %s1 = inlined_call_operand.vmem [shape: f32[8,2], index: 1, kind: input, shape index: {}]
  %s2 = inlined_call_operand.vmem [shape: f32[1,2], index: 2, kind: input, shape index: {}]
  %s3 = inlined_call_operand.vmem [shape: f32[2,8], index: 3, kind: input, shape index: {}]
  %s4 = inlined_call_operand.vmem [shape: f32[1,8], index: 4, kind: input, shape index: {}]
  %s5 = inlined_call_operand.hbm [shape: f32[3,8,196], index: 5, kind: output, shape index: {}]
  %s6 = sld [smem:[#allocation0]]
  $region57: #{tpu_custom_call.1} parent=0
    _
  %s8 = ssub.s32 1, %s6
  %s9 = scalar_select 0, %s8, %s6
  $region1: #{tpu_custom_call.1} parent=0
    #allocation2 [shape = 'u8[32768]{0}', space=vmem, size = 0x8000, scoped, tag = 'input window, operand 0']
    #allocation3 [shape = 's32[2]{0}', space=sflag, size = 0x8, scoped, tag = 'scoped memory for tpu_custom_call.1']
    #allocation4 [shape = 's32[2]{0}', space=sflag, size = 0x8, scoped, tag = 'scoped memory for tpu_custom_call.1']
    #allocation5 [shape = 'u8[32768]{0}', space=vmem, size = 0x8000, scoped, tag = 'output window, operand 0']
    %10 = vsyncpa [#allocation3], 0
    %s11 = scalar_lea.sflag [#allocation3], 1
    %12 = vsyncpa %s11, 0
    %13 = vsyncpa [#allocation4], 0
    %s14 = scalar_lea.sflag [#allocation4], 1
    %15 = vsyncpa %s14, 0
    loop: start=0, step=1, limit=4
    $region2: #{tpu_custom_call.1} parent=1 // loop_pre_header
      _
    $region3: #{tpu_custom_call.1} parent=1 // loop_header
      %s17 = sphi 0, %s21
      %p18 = scmp.ge.s32.totalorder %s17, 4
      %s27 = sphi 0, %s29
      %s30 = sphi 0, %s27
      %s31 = sphi 0, %s30
      %s47 = sphi 0, %s31
      %s51 = sphi 0, %s51
      %s53 = sphi 0, %s51
      %s54 = sphi 0, %s53
      %s68 = sphi 0, %s54
      %s72 = sphi 0, %s72
      %s74 = sphi 0, %s72
      %s75 = sphi 0, %s74
      %s89 = sphi 0, %s75
      %s93 = sphi 0, %s93
      %s95 = sphi 0, %s93
      %s96 = sphi 0, %s95
      %s110 = sphi 0, %s96
      %s114 = sphi 0, %s114
      %s116 = sphi 0, %s114
      %s117 = sphi 0, %s116
      %s131 = sphi 0, %s117
      %s137 = sphi 0, %s139
      %s140 = sphi 0, %s137
      %s141 = sphi 0, %s140
      %s157 = sphi 0, %s141
    $region4: #{tpu_custom_call.1} parent=1 // loop_header_branch
      %20 = sbr.rel (%p18) target = $region8
    $region5: #{tpu_custom_call.1} parent=1 // loop_body
      %s22 = ssub.s32 %s17, 1
      %s23 = ssub.s32 %s17, 2
      %s24 = sadd.s32 %s17, 1
      %s25 = ssub.s32 %s17, %s24
      %p26 = scmp.eq.s32.totalorder %s25, 0
      %s28 = sadd.s32 %s27, 1
      %s29 = scalar_select %p26, %s27, %s28
      %p32 = pneg %p26
      %p33 = scmp.eq.s32.totalorder %s17, 1
      %p34 = por %p32, %p33
      %p35 = scmp.ne.s32.totalorder %s27, %s30
      %p36 = scmp.eq.s32.totalorder %s17, 0
      %p37 = por %p35, %p36
      %p38 = scmp.ne.s32.totalorder %s27, %s30
      %p39 = scmp.eq.s32.totalorder %s22, 1
      %p40 = por %p38, %p39
      %p41 = scmp.ne.s32.totalorder %s30, %s31
      %p42 = scmp.eq.s32.totalorder %s22, 0
      %p43 = por %p41, %p42
      %p44 = scmp.ne.s32.totalorder %s30, %s31
      %p45 = scmp.eq.s32.totalorder %s23, 1
      %p46 = por %p44, %p45
      %p48 = scmp.ne.s32.totalorder %s31, %s47
      %p49 = scmp.eq.s32.totalorder %s23, 0
      %p50 = por %p48, %p49
      %s52 = sadd.s32 %s51, 1
      %p55 = scmp.eq.s32.totalorder %s17, 1
      %p56 = scmp.ne.s32.totalorder %s51, %s53
      %p57 = scmp.eq.s32.totalorder %s17, 0
      %p58 = por %p56, %p57
      %p59 = scmp.ne.s32.totalorder %s51, %s53
      %p60 = scmp.eq.s32.totalorder %s22, 1
      %p61 = por %p59, %p60
      %p62 = scmp.ne.s32.totalorder %s53, %s54
      %p63 = scmp.eq.s32.totalorder %s22, 0
      %p64 = por %p62, %p63
      %p65 = scmp.ne.s32.totalorder %s53, %s54
      %p66 = scmp.eq.s32.totalorder %s23, 1
      %p67 = por %p65, %p66
      %p69 = scmp.ne.s32.totalorder %s54, %s68
      %p70 = scmp.eq.s32.totalorder %s23, 0
      %p71 = por %p69, %p70
      %s73 = sadd.s32 %s72, 1
      %p76 = scmp.eq.s32.totalorder %s17, 1
      %p77 = scmp.ne.s32.totalorder %s72, %s74
      %p78 = scmp.eq.s32.totalorder %s17, 0
      %p79 = por %p77, %p78
      %p80 = scmp.ne.s32.totalorder %s72, %s74
      %p81 = scmp.eq.s32.totalorder %s22, 1
      %p82 = por %p80, %p81
      %p83 = scmp.ne.s32.totalorder %s74, %s75
      %p84 = scmp.eq.s32.totalorder %s22, 0
      %p85 = por %p83, %p84
      %p86 = scmp.ne.s32.totalorder %s74, %s75
      %p87 = scmp.eq.s32.totalorder %s23, 1
      %p88 = por %p86, %p87
      %p90 = scmp.ne.s32.totalorder %s75, %s89
      %p91 = scmp.eq.s32.totalorder %s23, 0
      %p92 = por %p90, %p91
      %s94 = sadd.s32 %s93, 1
      %p97 = scmp.eq.s32.totalorder %s17, 1
      %p98 = scmp.ne.s32.totalorder %s93, %s95
      %p99 = scmp.eq.s32.totalorder %s17, 0
      %p100 = por %p98, %p99
      %p101 = scmp.ne.s32.totalorder %s93, %s95
      %p102 = scmp.eq.s32.totalorder %s22, 1
      %p103 = por %p101, %p102
      %p104 = scmp.ne.s32.totalorder %s95, %s96
      %p105 = scmp.eq.s32.totalorder %s22, 0
      %p106 = por %p104, %p105
      %p107 = scmp.ne.s32.totalorder %s95, %s96
      %p108 = scmp.eq.s32.totalorder %s23, 1
      %p109 = por %p107, %p108
      %p111 = scmp.ne.s32.totalorder %s96, %s110
      %p112 = scmp.eq.s32.totalorder %s23, 0
      %p113 = por %p111, %p112
      %s115 = sadd.s32 %s114, 1
      %p118 = scmp.eq.s32.totalorder %s17, 1
      %p119 = scmp.ne.s32.totalorder %s114, %s116
      %p120 = scmp.eq.s32.totalorder %s17, 0
      %p121 = por %p119, %p120
      %p122 = scmp.ne.s32.totalorder %s114, %s116
      %p123 = scmp.eq.s32.totalorder %s22, 1
      %p124 = por %p122, %p123
      %p125 = scmp.ne.s32.totalorder %s116, %s117
      %p126 = scmp.eq.s32.totalorder %s22, 0
      %p127 = por %p125, %p126
      %p128 = scmp.ne.s32.totalorder %s116, %s117
      %p129 = scmp.eq.s32.totalorder %s23, 1
      %p130 = por %p128, %p129
      %p132 = scmp.ne.s32.totalorder %s117, %s131
      %p133 = scmp.eq.s32.totalorder %s23, 0
      %p134 = por %p132, %p133
      %s135 = ssub.s32 %s17, %s24
      %p136 = scmp.eq.s32.totalorder %s135, 0
      %s138 = sadd.s32 %s137, 1
      %s139 = scalar_select %p136, %s137, %s138
      %p142 = pneg %p136
      %p143 = scmp.eq.s32.totalorder %s17, 1
      %p144 = por %p142, %p143
      %p145 = scmp.ne.s32.totalorder %s137, %s140
      %p146 = scmp.eq.s32.totalorder %s17, 0
      %p147 = por %p145, %p146
      %p148 = scmp.ne.s32.totalorder %s137, %s140
      %p149 = scmp.eq.s32.totalorder %s22, 1
      %p150 = por %p148, %p149
      %p151 = scmp.ne.s32.totalorder %s140, %s141
      %p152 = scmp.eq.s32.totalorder %s22, 0
      %p153 = por %p151, %p152
      %p154 = scmp.ne.s32.totalorder %s140, %s141
      %p155 = scmp.eq.s32.totalorder %s23, 1
      %p156 = por %p154, %p155
      %p158 = scmp.ne.s32.totalorder %s141, %s157
      %p159 = scmp.eq.s32.totalorder %s23, 0
      %p160 = por %p158, %p159
      %p161 = scmp.le.s32.totalorder 1, %s17
      %p162 = scmp.lt.s32.totalorder %s17, 3
      %p163 = pnand %p161, %p162
      %p164 = pneg %p163
      // Predicated region
      $region9: #{tpu_custom_call.1} parent=5 // pred_check
        _
      $region10: #{tpu_custom_call.1} parent=5 // pred_check_branch
        %166 = sbr.rel (%p163) target = $region12
      $region11: #{tpu_custom_call.1} parent=5 // pred_region
        %s167 = ssub.s32 %s17, 1
        // Predicated region
        $region13: #{tpu_custom_call.1} parent=11 // pred_check
          %p168 = pneg %p64
        $region14: #{tpu_custom_call.1} parent=11 // pred_check_branch
          %170 = sbr.rel (%p168) target = $region16
        $region15: #{tpu_custom_call.1} parent=11 // pred_region
          _
        $region16: #{tpu_custom_call.1} parent=11 // pred_fallthru
          _
        // Predicated region
        $region17: #{tpu_custom_call.1} parent=11 // pred_check
          %p171 = pneg %p85
        $region18: #{tpu_custom_call.1} parent=11 // pred_check_branch
          %173 = sbr.rel (%p171) target = $region20
        $region19: #{tpu_custom_call.1} parent=11 // pred_region
          _
        $region20: #{tpu_custom_call.1} parent=11 // pred_fallthru
          _
        // Predicated region
        $region21: #{tpu_custom_call.1} parent=11 // pred_check
          %p174 = pneg %p106
        $region22: #{tpu_custom_call.1} parent=11 // pred_check_branch
          %176 = sbr.rel (%p174) target = $region24
        $region23: #{tpu_custom_call.1} parent=11 // pred_region
          _
        $region24: #{tpu_custom_call.1} parent=11 // pred_fallthru
          _
        // Predicated region
        $region25: #{tpu_custom_call.1} parent=11 // pred_check
          %p177 = pneg %p127
        $region26: #{tpu_custom_call.1} parent=11 // pred_check_branch
          %179 = sbr.rel (%p177) target = $region28
        $region27: #{tpu_custom_call.1} parent=11 // pred_region
          _
        $region28: #{tpu_custom_call.1} parent=11 // pred_fallthru
          _
      $region12: #{tpu_custom_call.1} parent=5 // pred_fallthru
        _
      %p180 = scmp.lt.s32.totalorder %s17, 2
      // Predicated region
      $region29: #{tpu_custom_call.1} parent=5 // pred_check
        %p181 = pneg %p180
      $region30: #{tpu_custom_call.1} parent=5 // pred_check_branch
        %183 = sbr.rel (%p181) target = $region32
      $region31: #{tpu_custom_call.1} parent=5 // pred_region
        // Predicated region
        $region33: #{tpu_custom_call.1} parent=31 // pred_check
          %p184 = pneg %p37
        $region34: #{tpu_custom_call.1} parent=31 // pred_check_branch
          %186 = sbr.rel (%p184) target = $region36
        $region35: #{tpu_custom_call.1} parent=31 // pred_region
          %s187 = sand.u32 %s27, 1
          %s188 = scalar_lea.sflag [#allocation3], %s187
          %s189 = sand.u32 %s27, 1
          %s190 = smul.addr %s189, 32
          %s191 = scalar_lea.vmem [#allocation2], %s190
          %s192 = smul.u32 2, %s17
          %s193 = ssub.s32 3, %s192
          %p194 = scmp.lt.s32.totalorder %s193, 2
          %s195 = scalar_select %p194, %s193, 2
          %s196 = smul.u32 128, %s195
          %s197 = smul.u32 %s196, 2
          %s199 = ssub.s32 512, %s197
          %200 = vsyncadd %s188, %s199
          %p201 = scmp.ne.s32.totalorder 0, %s197
          %s202 = smul.addr %s192, 2
          %s203 = smul.addr %s202, 128
          %s204 = scalar_lea.hbm %s0, %s203
          %s205 = smul.u32 16, %s195
          %s206 = sshll.u32 %s191, 4
          %s207 = int_to_ptr.vmem [resolvable:$true] %s206
          %s208 = sshll.u32 %s205, 4
          %212 = dma.hbm_to_vmem [thread:$0]  (%p201), %s204, %s208, %s207, %s188, 256, 256, 16
        $region36: #{tpu_custom_call.1} parent=31 // pred_fallthru
          _
      $region32: #{tpu_custom_call.1} parent=5 // pred_fallthru
        _
      %p213 = scmp.le.s32.totalorder 1, %s17
      %p214 = scmp.lt.s32.totalorder %s17, 3
      %p215 = pnand %p213, %p214
      %p216 = pneg %p215
      // Predicated region
      $region37: #{tpu_custom_call.1} parent=5 // pred_check
        _
      $region38: #{tpu_custom_call.1} parent=5 // pred_check_branch
        %218 = sbr.rel (%p215) target = $region40
      $region39: #{tpu_custom_call.1} parent=5 // pred_region
        %s219 = ssub.s32 %s17, 1
        %s220 = sand.u32 %s30, 1
        %s221 = scalar_lea.sflag [#allocation3], %s220
        %s222 = sand.u32 %s30, 1
        %s223 = smul.addr %s222, 32
        %s224 = scalar_lea.vmem [#allocation2], %s223
        // Predicated region
        $region41: #{tpu_custom_call.1} parent=39 // pred_check
          %p225 = pneg %p43
        $region42: #{tpu_custom_call.1} parent=39 // pred_check_branch
          %227 = sbr.rel (%p225) target = $region44
        $region43: #{tpu_custom_call.1} parent=39 // pred_region
          %228 = dma.done %s221, 512
        $region44: #{tpu_custom_call.1} parent=39 // pred_fallthru
          _
        %s229 = sand.u32 %s30, 1
        %s230 = scalar_lea.sflag [#allocation3], %s229
        %s231 = sand.u32 %s30, 1
        %s232 = smul.addr %s231, 32
        %s233 = scalar_lea.vmem [#allocation2], %s232
        %p234 = pneg %p43
        %p235 = pneg %p40
        %p236 = pneg %p64
        %p237 = pneg %p61
        %p238 = pneg %p85
        %p239 = pneg %p82
        %p240 = pneg %p106
        %p241 = pneg %p103
        %p242 = pneg %p127
        %p243 = pneg %p124
        %p244 = pneg %p153
        %p245 = pneg %p150
        %s246 = sand.u32 %s140, 1
        %s247 = scalar_lea.sflag [#allocation4], %s246
        %s248 = sand.u32 %s140, 1
        %s249 = smul.addr %s248, 32
        %s250 = scalar_lea.vmem [#allocation5], %s249
        %s251 = smul.u32 2, %s22
        %s252 = ssub.s32 3, %s251
        %p253 = scmp.lt.s32.totalorder %s252, 2
        %s254 = scalar_select %p253, %s252, 2
        %s255 = smul.u32 128, %s254
        %s256 = smul.u32 %s255, 2
        %s257 = smul.u32 2, %s22
        %s258 = ssub.s32 3, %s257
        %p259 = scmp.lt.s32.totalorder %s258, 2
        %s260 = scalar_select %p259, %s258, 2
        %s261 = smul.u32 128, %s260
        %s262 = smul.u32 %s261, 2
        %v263 = vld [vmem:[%s224] sm:$0xff]
        %v264 = vld [vmem:[%s224 + $0x8] sm:$0xff]
        %v265 = vld [vmem:[%s224 + $0x10] sm:$0xff]
        %v266 = vld [vmem:[%s224 + $0x18] sm:$0xff]
        %vm267 = vcmask 556032
        %v268 = vsel %vm267, %v264, 0.0
        %v269 = vadd.f32 %v263, %v268
        %270 = vadd.xlane.f32.xlu0 %v269
        %v271 = vpop.xlane.xlu0 %270
        %v272 = vsel %vm267, %v266, 0.0
        %v273 = vadd.f32 %v265, %v272
        %274 = vadd.xlane.f32.xlu0 %v273
        %v275 = vpop.xlane.xlu0 %274
        %v276 = vmul.f32 %v271, 0.0051020407
        %v277 = vmul.f32 %v275, 0.0051020407
        %v278 = vld [vmem:[%s1] sm:$0xff]
        %v279 = vld [vmem:[%s2] sm:$0x1]
        %v281 = vlaneseq
        %v282 = vshrl.u32 %v281, 7
        %v283 = vsub.s32 0, %v282
        %v284 = vrot.slane %v279, %v283
        %v288 = vlaneseq
        %v289 = vand.u32 %v288, 127
        %v290 = vlaneseq
        %v291 = vshrl.u32 %v290, 7
        %v292 = vsub.s32 %v289, %v291
        %v293 = vrot.slane %v276, %v292
        %v294 = vlaneseq
        %v295 = vshrl.u32 %v294, 7
        %v296 = vsub.s32 %v289, %v295
        %v297 = vrot.slane %v277, %v296
        %vm298 = vcmask 1041409
        %v299 = vsel %vm298, %v297, %v293
        %vm300 = vcmask 64512
        %v301 = vsel %vm300, %v299, 0
        %303 = vmatprep.subr.mxu0 0.0
        %304 = vmatpush1.msra.mxu0 %v278
        %305 = vmatprep.subr.mxu0 0.0
        %306 = vmatpush1.msra.mxu0 0.0
        %307 = vmatprep.subr.mxu0 0.0
        %308 = vmatpush1.msra.mxu0 0.0
        %309 = vmatprep.subr.mxu0 0.0
        %310 = vmatpush1.msra.mxu0 0.0
        %311 = vmatprep.subr.mxu0 0.0
        %312 = vmatpush1.msra.mxu0 0.0
        %313 = vmatprep.subr.mxu0 0.0
        %314 = vmatpush1.msra.mxu0 0.0
        %315 = vmatprep.subr.mxu0 0.0
        %316 = vmatpush1.msra.mxu0 0.0
        %317 = vmatprep.subr.mxu0 0.0
        %318 = vmatpush1.msra.mxu0 0.0
        %319 = vmatprep.subr.mxu0 0.0
        %320 = vmatpush1.msra.mxu0 0.0
        %321 = vmatprep.subr.mxu0 0.0
        %322 = vmatpush1.msra.mxu0 0.0
        %323 = vmatprep.subr.mxu0 0.0
        %324 = vmatpush1.msra.mxu0 0.0
        %325 = vmatprep.subr.mxu0 0.0
        %326 = vmatpush1.msra.mxu0 0.0
        %327 = vmatprep.subr.mxu0 0.0
        %328 = vmatpush1.msra.mxu0 0.0
        %329 = vmatprep.subr.mxu0 0.0
        %330 = vmatpush1.msra.mxu0 0.0
        %331 = vmatprep.subr.mxu0 0.0
        %332 = vmatpush1.msra.mxu0 0.0
        %333 = vmatprep.subr.mxu0 0.0
        %334 = vmatpush1.msra.mxu0 0.0
        %335 = vmatprep.subr.mxu0 0.0
        %336 = vmatpush1.msra.mxu0 0.0
        %337 = vmatprep.subr.mxu0 0.0
        %338 = vmatpush1.msra.mxu0 0.0
        %339 = vmatprep.subr.mxu0 0.0
        %340 = vmatpush1.msra.mxu0 0.0
        %341 = vmatprep.subr.mxu0 0.0
        %342 = vmatpush1.msra.mxu0 0.0
        %343 = vmatprep.subr.mxu0 0.0
        %344 = vmatpush1.msra.mxu0 0.0
        %345 = vmatprep.subr.mxu0 0.0
        %346 = vmatpush1.msra.mxu0 0.0
        %347 = vmatprep.subr.mxu0 0.0
        %348 = vmatpush1.msra.mxu0 0.0
        %349 = vmatprep.subr.mxu0 0.0
        %350 = vmatpush1.msra.mxu0 0.0
        %351 = vmatprep.subr.mxu0 0.0
        %352 = vmatpush1.msra.mxu0 0.0
        %353 = vmatprep.subr.mxu0 0.0
        %354 = vmatpush1.msra.mxu0 0.0
        %355 = vmatprep.subr.mxu0 0.0
        %356 = vmatpush1.msra.mxu0 0.0
        %357 = vmatprep.subr.mxu0 0.0
        %358 = vmatpush1.msra.mxu0 0.0
        %359 = vmatprep.subr.mxu0 0.0
        %360 = vmatpush1.msra.mxu0 0.0
        %361 = vmatprep.subr.mxu0 0.0
        %362 = vmatpush1.msra.mxu0 0.0
        %363 = vmatprep.subr.mxu0 0.0
        %364 = vmatpush1.msra.mxu0 0.0
        %365 = vmatprep.subr.mxu0 0.0
        %366 = vmatpush1.msra.mxu0 0.0
        %367 = vmatprep.mubr.f32.mxu0 0.0
        %368 = vmatmul.mubr.f32.gmra.mrb[0].mxu0 %v301
        %v369 = vpop.f32.mrb[0].mxu0
        %v370 = vadd.f32 %v284, %v369
        %v371 = vpop.f32.mrb[0].mxu0
        %372 = vdwg.mxu0
        %v373 = vmax.f32 %v370, 0.0
        %v374 = vld [vmem:[%s3] sm:$0x3]
        %v375 = vld [vmem:[%s4] sm:$0x1]
        %v377 = vlaneseq
        %v378 = vshrl.u32 %v377, 7
        %v379 = vsub.s32 0, %v378
        %v380 = vrot.slane %v375, %v379
        %vm382 = vcmask 15360
        %v384 = vsel %vm382, %v373, 0
        %vm386 = vcmask 1041408
        %v388 = vsel %vm386, %v374, 0
        %390 = vmatprep.subr.mxu0 0.0
        %391 = vmatpush1.msra.mxu0 %v388
        %392 = vmatprep.subr.mxu0 0.0
        %393 = vmatpush1.msra.mxu0 0.0
        %394 = vmatprep.subr.mxu0 0.0
        %395 = vmatpush1.msra.mxu0 0.0
        %396 = vmatprep.subr.mxu0 0.0
        %397 = vmatpush1.msra.mxu0 0.0
        %398 = vmatprep.subr.mxu0 0.0
        %399 = vmatpush1.msra.mxu0 0.0
        %400 = vmatprep.subr.mxu0 0.0
        %401 = vmatpush1.msra.mxu0 0.0
        %402 = vmatprep.subr.mxu0 0.0
        %403 = vmatpush1.msra.mxu0 0.0
        %404 = vmatprep.subr.mxu0 0.0
        %405 = vmatpush1.msra.mxu0 0.0
        %406 = vmatprep.subr.mxu0 0.0
        %407 = vmatpush1.msra.mxu0 0.0
        %408 = vmatprep.subr.mxu0 0.0
        %409 = vmatpush1.msra.mxu0 0.0
        %410 = vmatprep.subr.mxu0 0.0
        %411 = vmatpush1.msra.mxu0 0.0
        %412 = vmatprep.subr.mxu0 0.0
        %413 = vmatpush1.msra.mxu0 0.0
        %414 = vmatprep.subr.mxu0 0.0
        %415 = vmatpush1.msra.mxu0 0.0
        %416 = vmatprep.subr.mxu0 0.0
        %417 = vmatpush1.msra.mxu0 0.0
        %418 = vmatprep.subr.mxu0 0.0
        %419 = vmatpush1.msra.mxu0 0.0
        %420 = vmatprep.subr.mxu0 0.0
        %421 = vmatpush1.msra.mxu0 0.0
        %422 = vmatprep.subr.mxu0 0.0
        %423 = vmatpush1.msra.mxu0 0.0
        %424 = vmatprep.subr.mxu0 0.0
        %425 = vmatpush1.msra.mxu0 0.0
        %426 = vmatprep.subr.mxu0 0.0
        %427 = vmatpush1.msra.mxu0 0.0
        %428 = vmatprep.subr.mxu0 0.0
        %429 = vmatpush1.msra.mxu0 0.0
        %430 = vmatprep.subr.mxu0 0.0
        %431 = vmatpush1.msra.mxu0 0.0
        %432 = vmatprep.subr.mxu0 0.0
        %433 = vmatpush1.msra.mxu0 0.0
        %434 = vmatprep.subr.mxu0 0.0
        %435 = vmatpush1.msra.mxu0 0.0
        %436 = vmatprep.subr.mxu0 0.0
        %437 = vmatpush1.msra.mxu0 0.0
        %438 = vmatprep.subr.mxu0 0.0
        %439 = vmatpush1.msra.mxu0 0.0
        %440 = vmatprep.subr.mxu0 0.0
        %441 = vmatpush1.msra.mxu0 0.0
        %442 = vmatprep.subr.mxu0 0.0
        %443 = vmatpush1.msra.mxu0 0.0
        %444 = vmatprep.subr.mxu0 0.0
        %445 = vmatpush1.msra.mxu0 0.0
        %446 = vmatprep.subr.mxu0 0.0
        %447 = vmatpush1.msra.mxu0 0.0
        %448 = vmatprep.subr.mxu0 0.0
        %449 = vmatpush1.msra.mxu0 0.0
        %450 = vmatprep.subr.mxu0 0.0
        %451 = vmatpush1.msra.mxu0 0.0
        %452 = vmatprep.subr.mxu0 0.0
        %453 = vmatpush1.msra.mxu0 0.0
        %454 = vmatprep.mubr.f32.mxu0 0.0
        %455 = vmatmul.mubr.f32.gmra.mrb[0].mxu0 %v384
        %v456 = vpop.f32.mrb[0].mxu0
        %v457 = vadd.f32 %v380, %v456
        %v458 = vpop.f32.mrb[0].mxu0
        %459 = vdwg.mxu0
        %v460 = vmax.f32 %v457, 0.0
        %v461 = vmin.f32 %v460, 1.0
        %v462 = vlaneseq
        %v463 = vshrl.u32 %v462, 7
        %v464 = vsub.s32 0, %v463
        %v465 = vrot.slane %v461, %v464
        %467 = vbcast.lane.b32.xlu0 %v465, 256
        %v468 = vpop.permute.xlu0 %467
        %v469 = vlaneseq
        %v470 = vshrl.u32 %v469, 7
        %v471 = vsub.s32 1, %v470
        %v472 = vrot.slane %v461, %v471
        %474 = vbcast.lane.b32.xlu0 %v472, 256
        %v475 = vpop.permute.xlu0 %474
        %v476 = vmul.f32 %v263, %v468
        %v477 = vmul.f32 %v264, %v468
        %v478 = vmul.f32 %v265, %v475
        %v479 = vmul.f32 %v266, %v475
        %480 = vst [vmem:[%s250] sm:$0xff] %v476
        %481 = vst.msk [vmem:[%s250 + $0x8] sm:$0xff] %vm267, %v477
        %482 = vst [vmem:[%s250 + $0x10] sm:$0xff] %v478
        %483 = vst.msk [vmem:[%s250 + $0x18] sm:$0xff] %vm267, %v479
        %s484 = sand.u32 %s140, 1
        %s485 = scalar_lea.sflag [#allocation4], %s484
        %s486 = sand.u32 %s140, 1
        %s487 = smul.addr %s486, 32
        %s488 = scalar_lea.vmem [#allocation5], %s487
        // Predicated region
        $region45: #{tpu_custom_call.1} parent=39 // pred_check
          %p489 = pneg %p150
        $region46: #{tpu_custom_call.1} parent=39 // pred_check_branch
          %491 = sbr.rel (%p489) target = $region48
        $region47: #{tpu_custom_call.1} parent=39 // pred_region
          %s492 = smul.u32 2, %s22
          %s493 = ssub.s32 3, %s492
          %p494 = scmp.lt.s32.totalorder %s493, 2
          %s495 = scalar_select %p494, %s493, 2
          %s496 = smul.u32 128, %s495
          %s497 = smul.u32 %s496, 2
          %s499 = ssub.s32 512, %s497
          %500 = vsyncadd %s485, %s499
          %p501 = scmp.ne.s32.totalorder 0, %s497
          %s502 = smul.addr %s492, 2
          %s503 = smul.addr %s502, 128
          %s504 = scalar_lea.hbm %s5, %s503
          %s505 = smul.u32 16, %s495
          %s506 = sshll.u32 %s488, 4
          %s507 = int_to_ptr.vmem [resolvable:$true] %s506
          %s508 = sshll.u32 %s505, 4
          %512 = dma.vmem_to_hbm [thread:$0]  (%p501), %s507, %s508, %s504, %s485, 256, 256, 16
        $region48: #{tpu_custom_call.1} parent=39 // pred_fallthru
          _
      $region40: #{tpu_custom_call.1} parent=5 // pred_fallthru
        _
      %p513 = scmp.le.s32.totalorder 2, %s17
      // Predicated region
      $region49: #{tpu_custom_call.1} parent=5 // pred_check
        %p514 = pneg %p513
      $region50: #{tpu_custom_call.1} parent=5 // pred_check_branch
        %516 = sbr.rel (%p514) target = $region52
      $region51: #{tpu_custom_call.1} parent=5 // pred_region
        %s517 = ssub.s32 %s17, 2
        // Predicated region
        $region53: #{tpu_custom_call.1} parent=51 // pred_check
          %p518 = pneg %p156
        $region54: #{tpu_custom_call.1} parent=51 // pred_check_branch
          %520 = sbr.rel (%p518) target = $region56
        $region55: #{tpu_custom_call.1} parent=51 // pred_region
          %s521 = sand.u32 %s141, 1
          %s522 = scalar_lea.sflag [#allocation4], %s521
          %s523 = sand.u32 %s141, 1
          %s524 = smul.addr %s523, 32
          %s525 = scalar_lea.vmem [#allocation5], %s524
          %526 = dma.done %s522, 512
        $region56: #{tpu_custom_call.1} parent=51 // pred_fallthru
          _
      $region52: #{tpu_custom_call.1} parent=5 // pred_fallthru
        _
    $region6: #{tpu_custom_call.1} parent=1 // loop_footer
      %s21 = sadd.s32 1, %s17
    $region7: #{tpu_custom_call.1} parent=1 // loop_footer_branch
      %16 = sbr.rel target = $region3
    $region8: #{tpu_custom_call.1} parent=1 // loop_exit
      _
    %527 = vsyncpa [#allocation3], 1
    %s528 = scalar_lea.sflag [#allocation3], 1
    %529 = vsyncpa %s528, 1
    %530 = vsyncpa [#allocation4], 1
    %s531 = scalar_lea.sflag [#allocation4], 1
    %532 = vsyncpa %s531, 1

</llo_original>
